<compile_context>
chip_gen: v7x
topology: tpu7x:2x2x1
jax: 0.10.0
libtpu: 0.0.40
codegen_flags: <defaults>
</compile_context>

<pallas_src>
import functools

import jax
import jax.numpy as jnp
from jax.experimental import pallas as pl
from jax.experimental.pallas import tpu as pltpu


def _wing_kernel(x_ref, t_ref, o_ref, *, omega, inv_epsilon):
    d = jnp.abs(x_ref[...] - t_ref[...])
    # case1: d <  omega -> log(1 + d / epsilon)
    # case2: d >= omega -> d - 0.5   (faithful to the PyTorch module's constant)
    o_ref[...] = jnp.where(d < omega, jnp.log1p(d * inv_epsilon), d - 0.5)


def _pick_lane_width(total):
    # Widest lane-dense width (multiple of 128) that divides `total` exactly,
    # so no padding copy is needed.  Returns None if nothing divides.
    for w in (8192, 4096, 2048, 1024, 512, 256, 128):
        if total % w == 0:
            return w
    return None


# ~2 MiB f32 blocks: 2 inputs + 1 output, double-buffered -> ~12 MiB VMEM.
_TARGET_BLOCK_ELEMS = 512 * 1024


def wing_loss(inputs, target, omega=1.0, epsilon=1.54):
    assert inputs.shape == target.shape
    orig_shape = inputs.shape
    dtype = inputs.dtype
    itemsize = jnp.dtype(dtype).itemsize

    total = 1
    for s in orig_shape:
        total *= s

    x = jnp.ravel(inputs)
    t = jnp.ravel(target)

    lane_w = _pick_lane_width(total)
    padded_total = total
    if lane_w is None:
        # Rare fallback (odd element counts): pad to a lane-dense width.
        lane_w = 1024
        padded_total = pl.cdiv(total, lane_w) * lane_w
        x = jnp.pad(x, (0, padded_total - total))
        t = jnp.pad(t, (0, padded_total - total))

    rows = padded_total // lane_w
    x2 = x.reshape(rows, lane_w)
    t2 = t.reshape(rows, lane_w)

    # Row-block size: ~2 MiB per block, multiple of 8 sublanes; a partial last
    # block along rows is masked automatically by Pallas (cdiv grid).
    tm = max(8, (_TARGET_BLOCK_ELEMS // lane_w) // 8 * 8)
    if tm >= rows:
        tm = rows  # full extent (allowed even if not a multiple of 8)
    grid = (pl.cdiv(rows, tm),)

    kernel = functools.partial(
        _wing_kernel, omega=float(omega), inv_epsilon=float(1.0 / epsilon)
    )

    cost = pl.CostEstimate(
        flops=5 * total,
        transcendentals=total,
        bytes_accessed=3 * total * itemsize,
    )

    out2 = pl.pallas_call(
        kernel,
        out_shape=jax.ShapeDtypeStruct((rows, lane_w), dtype),
        grid_spec=pltpu.PrefetchScalarGridSpec(
            num_scalar_prefetch=0,
            grid=grid,
            in_specs=[
                pl.BlockSpec((tm, lane_w), lambda i: (i, 0)),
                pl.BlockSpec((tm, lane_w), lambda i: (i, 0)),
            ],
            out_specs=pl.BlockSpec((tm, lane_w), lambda i: (i, 0)),
        ),
        compiler_params=pltpu.CompilerParams(
            dimension_semantics=("parallel",)
        ),
        cost_estimate=cost,
    )(x2, t2)

    if padded_total != total:
        return out2.reshape(-1)[:total].reshape(orig_shape)
    return out2.reshape(orig_shape)


def wing_loss_ref(inputs, target, omega=1.0, epsilon=1.54):
    d = jnp.abs(inputs - target)
    return jnp.where(d < omega, jnp.log1p(d / epsilon), d - 0.5)


if __name__ == "__main__":
    key = jax.random.PRNGKey(0)

    # Primary check: NCHW shape consistent with the detection-regression use.
    k1, k2, k3, k4, k5, k6 = jax.random.split(key, 6)
    shape = (2, 4, 16, 16)
    inputs = jax.random.normal(k1, shape, dtype=jnp.float32) * 2.0
    target = jax.random.normal(k2, shape, dtype=jnp.float32) * 2.0
    out = jax.block_until_ready(wing_loss(inputs, target))
    assert out.shape == shape
    assert jnp.allclose(out, wing_loss_ref(inputs, target), atol=1e-5, rtol=1e-5)

    # Secondary check: exercises grid > 1 and a partial (masked) row block.
    shape2 = (4, 32, 72, 72)  # 663552 elems -> lane_w=8192, rows=81, tm=64
    a = jax.random.normal(k3, shape2, dtype=jnp.float32) * 2.0
    b = jax.random.normal(k4, shape2, dtype=jnp.float32) * 2.0
    out2 = jax.block_until_ready(wing_loss(a, b))
    assert jnp.allclose(out2, wing_loss_ref(a, b), atol=1e-5, rtol=1e-5)

    # Tertiary check: odd element count -> pad fallback path.
    shape3 = (3, 5, 17, 13)
    c = jax.random.normal(k5, shape3, dtype=jnp.float32) * 2.0
    d = jax.random.normal(k6, shape3, dtype=jnp.float32) * 2.0
    out3 = jax.block_until_ready(wing_loss(c, d))
    assert jnp.allclose(out3, wing_loss_ref(c, d), atol=1e-5, rtol=1e-5)

    print("KERNEL_OK")
</pallas_src>

<mosaic_0001>
module attributes {stable_mosaic.version = 11 : i64} {
  func.func @_wing_kernel(%arg0: i32, %arg1: memref<1x2048xf32, #tpu.memory_space<vmem>>, %arg2: memref<1x2048xf32, #tpu.memory_space<vmem>>, %arg3: memref<1x2048xf32, #tpu.memory_space<vmem>>) attributes {dimension_semantics = [#tpu.dimension_semantics<parallel>], iteration_bounds = array<i64: 1>, scalar_prefetch = 0 : i64, scratch_operands = 0 : i64, tpu.core_type = #tpu.core_type<tc>, window_params = [{transform_indices = @transform_0, window_bounds = array<i64: 1, 2048>}, {transform_indices = @transform_1, window_bounds = array<i64: 1, 2048>}, {transform_indices = @transform_2, window_bounds = array<i64: 1, 2048>}]} {
    %c0 = arith.constant 0 : index
    %c0_0 = arith.constant 0 : index
    %0 = vector.load %arg1[%c0, %c0_0] : memref<1x2048xf32, #tpu.memory_space<vmem>>, vector<1x2048xf32>
    %c0_1 = arith.constant 0 : index
    %c0_2 = arith.constant 0 : index
    %1 = vector.load %arg2[%c0_1, %c0_2] : memref<1x2048xf32, #tpu.memory_space<vmem>>, vector<1x2048xf32>
    %2 = arith.subf %0, %1 : vector<1x2048xf32>
    %3 = math.absf %2 : vector<1x2048xf32>
    %cst = arith.constant 1.000000e+00 : f32
    %4 = vector.broadcast %cst : f32 to vector<1x2048xf32>
    %5 = arith.cmpf olt, %3, %4 : vector<1x2048xf32>
    %cst_3 = arith.constant 0.649350643 : f32
    %6 = vector.broadcast %cst_3 : f32 to vector<1x2048xf32>
    %7 = arith.mulf %3, %6 : vector<1x2048xf32>
    %8 = math.log1p %7 : vector<1x2048xf32>
    %cst_4 = arith.constant 5.000000e-01 : f32
    %9 = vector.broadcast %cst_4 : f32 to vector<1x2048xf32>
    %10 = arith.subf %3, %9 : vector<1x2048xf32>
    %11 = arith.select %5, %8, %10 : vector<1x2048xi1>, vector<1x2048xf32>
    %c0_5 = arith.constant 0 : index
    %c0_6 = arith.constant 0 : index
    %12 = vector.load %arg3[%c0_5, %c0_6] : memref<1x2048xf32, #tpu.memory_space<vmem>>, vector<1x2048xf32>
    tpu.vector_store %arg3[%c0_5, %c0_6], %11 {strides = array<i32>} : memref<1x2048xf32, #tpu.memory_space<vmem>>, vector<1x2048xf32>,
    return
  }
  func.func @transform_0(%arg0: i32) -> (i32, i32) {
    %c0_i32 = arith.constant 0 : i32
    %c0_i32_0 = arith.constant 0 : i32
    return %arg0, %c0_i32 : i32, i32
  }
  func.func @transform_1(%arg0: i32) -> (i32, i32) {
    %c0_i32 = arith.constant 0 : i32
    %c0_i32_0 = arith.constant 0 : i32
    return %arg0, %c0_i32 : i32, i32
  }
  func.func @transform_2(%arg0: i32) -> (i32, i32) {
    %c0_i32 = arith.constant 0 : i32
    %c0_i32_0 = arith.constant 0 : i32
    return %arg0, %c0_i32 : i32, i32
  }
}

</mosaic_0001>

<llo_original>
// kernel: tpu_custom_call.1
$region0: #{tpu_custom_call.1}
  #allocation0 [shape = 'u32[]', space=smem, size = 0x4, offset = 0x4, fixed_abs, tag = 'smem constant byte address 0x4 - core index']
  #allocation1 [shape = 'u32[144,128]{1,0:T(1,128)}', space=vmem, size = 0x12000, scoped, tag = 'internal scratch']
  %s0 = inlined_call_operand.hbm [shape: f32[1,2048], index: 0, kind: input, shape index: {}]
  %s1 = inlined_call_operand.hbm [shape: f32[1,2048], index: 1, kind: input, shape index: {}]
  %s2 = inlined_call_operand.hbm [shape: f32[1,2048], index: 2, kind: output, shape index: {}]
  %s3 = sld [smem:[#allocation0]]
  $region26: #{tpu_custom_call.1} parent=0
    _
  %s5 = ssub.s32 1, %s3
  %s6 = scalar_select 0, %s5, %s3
  $region1: #{tpu_custom_call.1} parent=0
    #allocation2 [shape = 'u8[8192]{0}', space=vmem, size = 0x2000, scoped, tag = 'input window, operand 0, single buffered']
    #allocation3 [shape = 's32[1]{0}', space=sflag, size = 0x4, scoped, tag = 'scoped memory for tpu_custom_call.1']
    #allocation4 [shape = 's32[1]{0}', space=sflag, size = 0x4, scoped, tag = 'scoped memory for tpu_custom_call.1']
    #allocation5 [shape = 'u8[8192]{0}', space=vmem, size = 0x2000, scoped, tag = 'input window, operand 1, single buffered']
    #allocation6 [shape = 's32[1]{0}', space=sflag, size = 0x4, scoped, tag = 'scoped memory for tpu_custom_call.1']
    #allocation7 [shape = 'u8[8192]{0}', space=vmem, size = 0x2000, scoped, tag = 'output window, operand 0, single buffered']
    %7 = vsyncpa [#allocation3], 0
    %8 = vsyncpa [#allocation6], 0
    %9 = vsyncpa [#allocation4], 0
    // Predicated region
    $region2: #{tpu_custom_call.1} parent=1 // pred_check
      _
    $region3: #{tpu_custom_call.1} parent=1 // pred_check_branch
      %11 = sbr.rel (0) target = $region5
    $region4: #{tpu_custom_call.1} parent=1 // pred_region
      %s13 = ssub.s32 256, 256
      %14 = vsyncadd [#allocation3], %s13
      %s16 = sshll.u32 [#allocation2], 4
      %s17 = int_to_ptr.vmem [resolvable:$true] %s16
      %19 = dma.hbm_to_vmem [thread:$0]  %s0, 256, %s17, [#allocation3]
    $region5: #{tpu_custom_call.1} parent=1 // pred_fallthru
      _
    // Predicated region
    $region6: #{tpu_custom_call.1} parent=1 // pred_check
      _
    $region7: #{tpu_custom_call.1} parent=1 // pred_check_branch
      %21 = sbr.rel (0) target = $region9
    $region8: #{tpu_custom_call.1} parent=1 // pred_region
      %s23 = ssub.s32 256, 256
      %24 = vsyncadd [#allocation6], %s23
      %s26 = sshll.u32 [#allocation5], 4
      %s27 = int_to_ptr.vmem [resolvable:$true] %s26
      %29 = dma.hbm_to_vmem [thread:$0]  %s1, 256, %s27, [#allocation6]
    $region9: #{tpu_custom_call.1} parent=1 // pred_fallthru
      _
    // Predicated region
    $region10: #{tpu_custom_call.1} parent=1 // pred_check
      _
    $region11: #{tpu_custom_call.1} parent=1 // pred_check_branch
      %31 = sbr.rel (0) target = $region13
    $region12: #{tpu_custom_call.1} parent=1 // pred_region
      %32 = dma.done [#allocation3], 256
    $region13: #{tpu_custom_call.1} parent=1 // pred_fallthru
      _
    // Predicated region
    $region14: #{tpu_custom_call.1} parent=1 // pred_check
      _
    $region15: #{tpu_custom_call.1} parent=1 // pred_check_branch
      %34 = sbr.rel (0) target = $region17
    $region16: #{tpu_custom_call.1} parent=1 // pred_region
      %35 = dma.done [#allocation6], 256
    $region17: #{tpu_custom_call.1} parent=1 // pred_fallthru
      _
    %v36 = vld [vmem:[#allocation2] sm:$0xff]
    %v37 = vld [vmem:[#allocation2 + $0x8] sm:$0xff]
    %v38 = vld [vmem:[#allocation5] sm:$0xff]
    %v39 = vld [vmem:[#allocation5 + $0x8] sm:$0xff]
    %v40 = vsub.f32 %v36, %v38
    %v41 = vsub.f32 %v37, %v39
    %v42 = vand.u32 2147483647, %v40
    %v43 = vand.u32 2147483647, %v41
    %vm44 = vcmp.lt.f32.partialorder %v42, 1.0
    %vm45 = vcmp.lt.f32.partialorder %v43, 1.0
    %v46 = vmul.f32 %v42, 0.64935064
    %v47 = vmul.f32 %v43, 0.64935064
    %v48 = vadd.f32 %v46, 1.0
    %v49 = vlog2.pop %v48
    %v50 = vmul.f32 %v49, 0.6931472
    %v51 = vmul.f32 -0.5, %v46
    %v52 = vadd.f32 %v51, 1.0
    %v53 = vmul.f32 %v52, %v46
    %v54 = vand.u32 2147483647, %v46
    %vm55 = vcmp.lt.f32.partialorder %v54, 0.0004427343
    %v56 = vsel %vm55, %v53, %v50
    %v57 = vadd.f32 %v47, 1.0
    %v58 = vlog2.pop %v57
    %v59 = vmul.f32 %v58, 0.6931472
    %v60 = vmul.f32 -0.5, %v47
    %v61 = vadd.f32 %v60, 1.0
    %v62 = vmul.f32 %v61, %v47
    %v63 = vand.u32 2147483647, %v47
    %vm64 = vcmp.lt.f32.partialorder %v63, 0.0004427343
    %v65 = vsel %vm64, %v62, %v59
    %v66 = vsub.f32 %v42, 0.5
    %v67 = vsub.f32 %v43, 0.5
    %v68 = vsel %vm44, %v56, %v66
    %v69 = vsel %vm45, %v65, %v67
    %70 = vst [vmem:[#allocation7] sm:$0xff] %v68
    %71 = vst [vmem:[#allocation7 + $0x8] sm:$0xff] %v69
    // Predicated region
    $region18: #{tpu_custom_call.1} parent=1 // pred_check
      _
    $region19: #{tpu_custom_call.1} parent=1 // pred_check_branch
      %73 = sbr.rel (0) target = $region21
    $region20: #{tpu_custom_call.1} parent=1 // pred_region
      %s75 = ssub.s32 256, 256
      %76 = vsyncadd [#allocation4], %s75
      %s78 = sshll.u32 [#allocation7], 4
      %s79 = int_to_ptr.vmem [resolvable:$true] %s78
      %81 = dma.vmem_to_hbm [thread:$0]  %s79, 256, %s2, [#allocation4]
    $region21: #{tpu_custom_call.1} parent=1 // pred_fallthru
      _
    // Predicated region
    $region22: #{tpu_custom_call.1} parent=1 // pred_check
      _
    $region23: #{tpu_custom_call.1} parent=1 // pred_check_branch
      %83 = sbr.rel (0) target = $region25
    $region24: #{tpu_custom_call.1} parent=1 // pred_region
      %84 = dma.done [#allocation4], 256
    $region25: #{tpu_custom_call.1} parent=1 // pred_fallthru
      _
    %85 = vsyncpa [#allocation3], 1
    %86 = vsyncpa [#allocation6], 1
    %87 = vsyncpa [#allocation4], 1

</llo_original>
